<compile_context>
chip_gen: v7x
topology: tpu7x:2x2x1
jax: 0.10.0
libtpu: 0.0.40
codegen_flags: <defaults>
</compile_context>

<pallas_src>
import functools

import jax
import jax.numpy as jnp
from jax.experimental import pallas as pl
from jax.experimental.pallas import tpu as pltpu

LANE = 128            # lane width (last dim of the flattened slab)
OUT_ROWS = 8          # sublane height of each tile's partial-sum output block
MAX_TILE_ROWS = 4096  # rows per grid step (f32: 2 MiB/input/buffer)

_KEEP_DTYPES = (jnp.float32, jnp.bfloat16, jnp.float16)


def _storage_dtype(dtype):
    """Keep narrow float storage dtypes (stream fewer HBM bytes); else f32."""
    dtype = jnp.dtype(dtype)
    for d in _KEEP_DTYPES:
        if dtype == jnp.dtype(d):
            return dtype
    return jnp.dtype(jnp.float32)


def _dimension_semantics():
    """v7x has 2 TensorCores: actually shard the grid across them."""
    kind = ""
    try:
        kind = jax.devices()[0].device_kind.lower()
    except Exception:
        pass
    if "v7" in kind:
        return (pltpu.CORE_PARALLEL,)
    return ("parallel",)


def _make_wbce_kernel(*, eps, strip, n_strips, last_full_strips, tail_elems,
                      num_tiles, binary_labels):
    """Build the per-tile kernel. All sizing/masking constants are static."""
    unroll = 8 if strip <= 8 else 4

    def strip_terms(x_ref, y_ref, j):
        # One vreg strip: (strip, 128) of x and y, widened to f32.
        r0 = j * strip
        if not isinstance(r0, int):
            r0 = pl.multiple_of(r0, strip)
        x = x_ref[pl.ds(r0, strip), :].astype(jnp.float32)
        y = y_ref[pl.ds(r0, strip), :].astype(jnp.float32)
        if binary_labels:
            # Hard 0/1 labels: one log per element (halves EUP pushes).
            is_pos = y != 0.0
            l = jnp.log(jnp.where(is_pos, x + eps, (1.0 - x) + eps))
            pos = jnp.where(is_pos, l, 0.0)
            neg = jnp.where(is_pos, 0.0, l)
        else:
            pos = y * jnp.log(x + eps)
            neg = (1.0 - y) * jnp.log((1.0 - x) + eps)
        return pos, neg

    def reduce_full_strips(x_ref, y_ref, count):
        zeros = jnp.zeros((strip, LANE), jnp.float32)
        if count == 0:
            return zeros, zeros

        def body(j, carry):
            pos_acc, neg_acc = carry
            pos, neg = strip_terms(x_ref, y_ref, j)
            return pos_acc + pos, neg_acc + neg

        return jax.lax.fori_loop(0, count, body, (zeros, zeros),
                                 unroll=min(unroll, count))

    def fold8(a):
        # (strip, 128) f32 -> (8, 128): fold vreg-aligned row groups.
        out = a[:OUT_ROWS]
        for k in range(1, strip // OUT_ROWS):
            out = out + a[k * OUT_ROWS:(k + 1) * OUT_ROWS]
        return out

    def store(out_ref, pos_acc, neg_acc):
        # Single lane-dense (8, 256) output block: pos | neg.
        out_ref[:, :LANE] = fold8(pos_acc)
        out_ref[:, LANE:] = fold8(neg_acc)

    def full_tile(x_ref, y_ref, out_ref):
        pos_acc, neg_acc = reduce_full_strips(x_ref, y_ref, n_strips)
        store(out_ref, pos_acc, neg_acc)

    def last_tile(x_ref, y_ref, out_ref):
        # Mask-free loop over the fully-valid strips ...
        pos_acc, neg_acc = reduce_full_strips(x_ref, y_ref, last_full_strips)
        if tail_elems > 0:
            # ... plus ONE masked boundary strip (select-after-compute, so any
            # garbage/NaN in the stale / padded region is discarded exactly).
            pos, neg = strip_terms(x_ref, y_ref, last_full_strips)
            row = jax.lax.broadcasted_iota(jnp.int32, (strip, LANE), 0)
            lane = jax.lax.broadcasted_iota(jnp.int32, (strip, LANE), 1)
            valid = row * LANE + lane < tail_elems
            pos_acc = pos_acc + jnp.where(valid, pos, 0.0)
            neg_acc = neg_acc + jnp.where(valid, neg, 0.0)
        store(out_ref, pos_acc, neg_acc)

    last_is_full = (last_full_strips == n_strips) and (tail_elems == 0)

    def kernel(x_ref, y_ref, out_ref):
        if num_tiles == 1:
            last_tile(x_ref, y_ref, out_ref)
        elif last_is_full:
            full_tile(x_ref, y_ref, out_ref)
        else:
            i = pl.program_id(0)

            @pl.when(i != num_tiles - 1)
            def _():
                full_tile(x_ref, y_ref, out_ref)

            @pl.when(i == num_tiles - 1)
            def _():
                last_tile(x_ref, y_ref, out_ref)

    return kernel


def wbce_loss(inputs, labels, w_p, w_n, epsilon=1e-7, *, binary_labels=False,
              max_tile_rows=MAX_TILE_ROWS):
    """Weighted BCE loss (matches the PyTorch module's forward).

    inputs: probabilities in [0, 1], any shape.  labels: same (broadcastable)
    shape.  NaN/Inf behavior for inputs outside [0, 1] mirrors the reference.
    """
    if labels.shape != inputs.shape:
        labels = jnp.broadcast_to(labels, inputs.shape)
    n_valid = int(inputs.size)
    assert n_valid > 0

    x_dtype = _storage_dtype(inputs.dtype)
    y_dtype = _storage_dtype(labels.dtype)
    # One native vreg of the narrowest streamed dtype: f32 -> 8 rows, 16-bit -> 16.
    strip = max(32 // x_dtype.itemsize, 32 // y_dtype.itemsize)
    assert max_tile_rows % strip == 0 and max_tile_rows >= strip

    xf = jnp.ravel(inputs).astype(x_dtype)   # no-op if dtype already matches
    yf = jnp.ravel(labels).astype(y_dtype)

    rows = pl.cdiv(n_valid, LANE)
    lane_pad = rows * LANE - n_valid
    if lane_pad:
        # Rare fallback (size not a multiple of 128): pad the flat vectors so
        # they reshape to (rows, 128).  Padded elements are excluded exactly
        # by the in-kernel element-index mask (no analytic correction).
        xf = jnp.pad(xf, (0, lane_pad))
        yf = jnp.pad(yf, (0, lane_pad))

    tile_rows = min(max_tile_rows, pl.cdiv(rows, strip) * strip)
    num_tiles = pl.cdiv(rows, tile_rows)

    x2 = xf.reshape(rows, LANE)
    y2 = yf.reshape(rows, LANE)
    if num_tiles == 1 and tile_rows > rows:
        # Tiny input only: add a few rows so the single block never overruns
        # the array.  Excluded by the element mask; the copy is negligible.
        x2 = jnp.pad(x2, ((0, tile_rows - rows), (0, 0)))
        y2 = jnp.pad(y2, ((0, tile_rows - rows), (0, 0)))

    n_strips = tile_rows // strip
    last_elems = n_valid - (num_tiles - 1) * tile_rows * LANE
    last_full_strips = last_elems // (strip * LANE)
    tail_elems = last_elems - last_full_strips * strip * LANE

    kernel = _make_wbce_kernel(
        eps=float(epsilon), strip=strip, n_strips=n_strips,
        last_full_strips=last_full_strips, tail_elems=tail_elems,
        num_tiles=num_tiles, binary_labels=binary_labels)

    partials = pl.pallas_call(
        kernel,
        out_shape=jax.ShapeDtypeStruct((num_tiles * OUT_ROWS, 2 * LANE),
                                       jnp.float32),
        grid_spec=pltpu.PrefetchScalarGridSpec(
            num_scalar_prefetch=0,
            grid=(num_tiles,),
            in_specs=[
                pl.BlockSpec((tile_rows, LANE), lambda i: (i, 0)),
                pl.BlockSpec((tile_rows, LANE), lambda i: (i, 0)),
            ],
            out_specs=pl.BlockSpec((OUT_ROWS, 2 * LANE), lambda i: (i, 0)),
        ),
        compiler_params=pltpu.CompilerParams(
            dimension_semantics=_dimension_semantics(),
            vmem_limit_bytes=32 * 1024 * 1024,
        ),
    )(x2, y2)

    # Tiny epilogue reduction + weighting in plain JAX.
    pos_sum = jnp.sum(partials[:, :LANE], dtype=jnp.float32)
    neg_sum = jnp.sum(partials[:, LANE:], dtype=jnp.float32)
    inv_n = 1.0 / float(n_valid)
    # loss = -mean(w_p*y*log(x+eps)) - mean(w_n*(1-y)*log(1-x+eps))
    return -(w_p * pos_sum + w_n * neg_sum) * inv_n


def _wbce_ref(inputs, labels, w_p, w_n, epsilon=1e-7):
    """Pure-JAX reference mirroring the PyTorch forward."""
    inputs = inputs.astype(jnp.float32)
    labels = labels.astype(jnp.float32)
    loss_pos = -1.0 * jnp.mean(w_p * labels * jnp.log(inputs + epsilon))
    loss_neg = -1.0 * jnp.mean(w_n * (1.0 - labels) * jnp.log(1.0 - inputs + epsilon))
    return loss_pos + loss_neg


if __name__ == "__main__":
    # Deterministic "parameters" of the module (chosen in-script, no checkpoint).
    W_P = 2.0
    W_N = 0.5

    key = jax.random.PRNGKey(0)
    k_x, k_y, k_x2, k_y2 = jax.random.split(key, 4)

    # Primary case: small NCHW probabilities + binary labels.
    shape = (2, 4, 16, 16)
    inputs = jax.nn.sigmoid(jax.random.normal(k_x, shape, dtype=jnp.float32))
    labels = (jax.random.uniform(k_y, shape) > 0.5).astype(jnp.float32)
    loss = jax.block_until_ready(wbce_loss(inputs, labels, W_P, W_N))
    ref = _wbce_ref(inputs, labels, W_P, W_N)
    assert jnp.abs(loss - ref) < 1e-5, (loss, ref)

    # bf16 storage path (16-row strips, in-kernel widening).
    loss_bf16 = jax.block_until_ready(
        wbce_loss(inputs.astype(jnp.bfloat16), labels, W_P, W_N))
    ref_bf16 = _wbce_ref(inputs.astype(jnp.bfloat16), labels, W_P, W_N)
    assert jnp.abs(loss_bf16 - ref_bf16) < 2e-5, (loss_bf16, ref_bf16)

    # Opt-in one-log-per-element variant (labels here are exactly 0/1).
    loss_bin = jax.block_until_ready(
        wbce_loss(inputs, labels, W_P, W_N, binary_labels=True))
    assert jnp.abs(loss_bin - ref) < 1e-5, (loss_bin, ref)

    # Lane-ragged size (1000 elements): exercises the element-mask tail path.
    shape_r = (2, 500)
    inputs_r = jax.nn.sigmoid(jax.random.normal(k_x2, shape_r, dtype=jnp.float32))
    labels_r = (jax.random.uniform(k_y2, shape_r) > 0.5).astype(jnp.float32)
    loss_r = jax.block_until_ready(wbce_loss(inputs_r, labels_r, W_P, W_N))
    ref_r = _wbce_ref(inputs_r, labels_r, W_P, W_N)
    assert jnp.abs(loss_r - ref_r) < 1e-5, (loss_r, ref_r)

    # Multi-tile grid with a partially-valid last tile (small max_tile_rows).
    shape_m = (3, 4, 16, 16)
    inputs_m = jax.nn.sigmoid(jax.random.normal(k_x, shape_m, dtype=jnp.float32))
    labels_m = (jax.random.uniform(k_y, shape_m) > 0.5).astype(jnp.float32)
    loss_m = jax.block_until_ready(
        wbce_loss(inputs_m, labels_m, W_P, W_N, max_tile_rows=16))
    ref_m = _wbce_ref(inputs_m, labels_m, W_P, W_N)
    assert jnp.abs(loss_m - ref_m) < 1e-5, (loss_m, ref_m)

    print("KERNEL_OK")
</pallas_src>

<mosaic_0001>
module attributes {stable_mosaic.version = 11 : i64} {
  func.func @kernel(%arg0: i32, %arg1: memref<16x128xf32, #tpu.memory_space<vmem>>, %arg2: memref<16x128xf32, #tpu.memory_space<vmem>>, %arg3: memref<8x256xf32, #tpu.memory_space<vmem>>) attributes {dimension_semantics = [#tpu.dimension_semantics<parallel>], iteration_bounds = array<i64: 1>, scalar_prefetch = 0 : i64, scratch_operands = 0 : i64, tpu.core_type = #tpu.core_type<tc>, window_params = [{transform_indices = @transform_0, window_bounds = array<i64: 16, 128>}, {transform_indices = @transform_1, window_bounds = array<i64: 16, 128>}, {transform_indices = @transform_2, window_bounds = array<i64: 8, 256>}]} {
    %cst = arith.constant 0.000000e+00 : f32
    %0 = vector.broadcast %cst : f32 to vector<8x128xf32>
    %c0_i32 = arith.constant 0 : i32
    %c8_i32 = arith.constant 8 : i32
    %1 = arith.muli %c0_i32, %c8_i32 : i32
    %2 = tpu.assume_multiple %1, 8 : i32
    %3 = arith.index_cast %2 : i32 to index
    %c0 = arith.constant 0 : index
    %4 = vector.load %arg1[%3, %c0] : memref<16x128xf32, #tpu.memory_space<vmem>>, vector<8x128xf32>
    %5 = arith.index_cast %2 : i32 to index
    %c0_0 = arith.constant 0 : index
    %6 = vector.load %arg2[%5, %c0_0] : memref<16x128xf32, #tpu.memory_space<vmem>>, vector<8x128xf32>
    %cst_1 = arith.constant 1.000000e-07 : f32
    %7 = vector.broadcast %cst_1 : f32 to vector<8x128xf32>
    %8 = arith.addf %4, %7 : vector<8x128xf32>
    %9 = math.log %8 : vector<8x128xf32>
    %10 = arith.mulf %6, %9 : vector<8x128xf32>
    %cst_2 = arith.constant 1.000000e+00 : f32
    %11 = vector.broadcast %cst_2 : f32 to vector<8x128xf32>
    %12 = arith.subf %11, %6 : vector<8x128xf32>
    %cst_3 = arith.constant 1.000000e+00 : f32
    %13 = vector.broadcast %cst_3 : f32 to vector<8x128xf32>
    %14 = arith.subf %13, %4 : vector<8x128xf32>
    %cst_4 = arith.constant 1.000000e-07 : f32
    %15 = vector.broadcast %cst_4 : f32 to vector<8x128xf32>
    %16 = arith.addf %14, %15 : vector<8x128xf32>
    %17 = math.log %16 : vector<8x128xf32>
    %18 = arith.mulf %12, %17 : vector<8x128xf32>
    %19 = arith.addf %0, %10 : vector<8x128xf32>
    %20 = arith.addf %0, %18 : vector<8x128xf32>
    %c1_i32 = arith.constant 1 : i32
    %c8_i32_5 = arith.constant 8 : i32
    %21 = arith.muli %c1_i32, %c8_i32_5 : i32
    %22 = tpu.assume_multiple %21, 8 : i32
    %23 = arith.index_cast %22 : i32 to index
    %c0_6 = arith.constant 0 : index
    %24 = vector.load %arg1[%23, %c0_6] : memref<16x128xf32, #tpu.memory_space<vmem>>, vector<8x128xf32>
    %25 = arith.index_cast %22 : i32 to index
    %c0_7 = arith.constant 0 : index
    %26 = vector.load %arg2[%25, %c0_7] : memref<16x128xf32, #tpu.memory_space<vmem>>, vector<8x128xf32>
    %cst_8 = arith.constant 1.000000e-07 : f32
    %27 = vector.broadcast %cst_8 : f32 to vector<8x128xf32>
    %28 = arith.addf %24, %27 : vector<8x128xf32>
    %29 = math.log %28 : vector<8x128xf32>
    %30 = arith.mulf %26, %29 : vector<8x128xf32>
    %cst_9 = arith.constant 1.000000e+00 : f32
    %31 = vector.broadcast %cst_9 : f32 to vector<8x128xf32>
    %32 = arith.subf %31, %26 : vector<8x128xf32>
    %cst_10 = arith.constant 1.000000e+00 : f32
    %33 = vector.broadcast %cst_10 : f32 to vector<8x128xf32>
    %34 = arith.subf %33, %24 : vector<8x128xf32>
    %cst_11 = arith.constant 1.000000e-07 : f32
    %35 = vector.broadcast %cst_11 : f32 to vector<8x128xf32>
    %36 = arith.addf %34, %35 : vector<8x128xf32>
    %37 = math.log %36 : vector<8x128xf32>
    %38 = arith.mulf %32, %37 : vector<8x128xf32>
    %39 = arith.addf %19, %30 : vector<8x128xf32>
    %40 = arith.addf %20, %38 : vector<8x128xf32>
    %c2_i32 = arith.constant 2 : i32
    %c0_12 = arith.constant 0 : index
    %c0_13 = arith.constant 0 : index
    %41 = vector.load %arg3[%c0_12, %c0_13] : memref<8x256xf32, #tpu.memory_space<vmem>>, vector<8x128xf32>
    tpu.vector_store %arg3[%c0_12, %c0_13], %39 {strides = array<i32>} : memref<8x256xf32, #tpu.memory_space<vmem>>, vector<8x128xf32>,
    %c0_14 = arith.constant 0 : index
    %c128 = arith.constant 128 : index
    %42 = vector.load %arg3[%c0_14, %c128] : memref<8x256xf32, #tpu.memory_space<vmem>>, vector<8x128xf32>
    tpu.vector_store %arg3[%c0_14, %c128], %40 {strides = array<i32>} : memref<8x256xf32, #tpu.memory_space<vmem>>, vector<8x128xf32>,
    return
  }
  func.func @transform_0(%arg0: i32) -> (i32, i32) {
    %c0_i32 = arith.constant 0 : i32
    %c0_i32_0 = arith.constant 0 : i32
    return %arg0, %c0_i32 : i32, i32
  }
  func.func @transform_1(%arg0: i32) -> (i32, i32) {
    %c0_i32 = arith.constant 0 : i32
    %c0_i32_0 = arith.constant 0 : i32
    return %arg0, %c0_i32 : i32, i32
  }
  func.func @transform_2(%arg0: i32) -> (i32, i32) {
    %c0_i32 = arith.constant 0 : i32
    %c0_i32_0 = arith.constant 0 : i32
    return %arg0, %c0_i32 : i32, i32
  }
}

</mosaic_0001>

<llo_original>
// kernel: tpu_custom_call.1
$region0: #{tpu_custom_call.1}
  #allocation0 [shape = 'u32[]', space=smem, size = 0x4, offset = 0x4, fixed_abs, tag = 'smem constant byte address 0x4 - core index']
  #allocation1 [shape = 'u32[144,128]{1,0:T(1,128)}', space=vmem, size = 0x12000, scoped, tag = 'internal scratch']
  %s0 = inlined_call_operand.hbm [shape: f32[16,128], index: 0, kind: input, shape index: {}]
  %s1 = inlined_call_operand.hbm [shape: f32[16,128], index: 1, kind: input, shape index: {}]
  %s2 = inlined_call_operand.hbm [shape: f32[8,256], index: 2, kind: output, shape index: {}]
  %s3 = sld [smem:[#allocation0]]
  $region26: #{tpu_custom_call.1} parent=0
    _
  %s5 = ssub.s32 1, %s3
  %s6 = scalar_select 0, %s5, %s3
  $region1: #{tpu_custom_call.1} parent=0
    #allocation2 [shape = 'u8[8192]{0}', space=vmem, size = 0x2000, scoped, tag = 'input window, operand 0, single buffered']
    #allocation3 [shape = 's32[1]{0}', space=sflag, size = 0x4, scoped, tag = 'scoped memory for tpu_custom_call.1']
    #allocation4 [shape = 's32[1]{0}', space=sflag, size = 0x4, scoped, tag = 'scoped memory for tpu_custom_call.1']
    #allocation5 [shape = 'u8[8192]{0}', space=vmem, size = 0x2000, scoped, tag = 'input window, operand 1, single buffered']
    #allocation6 [shape = 's32[1]{0}', space=sflag, size = 0x4, scoped, tag = 'scoped memory for tpu_custom_call.1']
    #allocation7 [shape = 'u8[8192]{0}', space=vmem, size = 0x2000, scoped, tag = 'output window, operand 0, single buffered']
    %7 = vsyncpa [#allocation3], 0
    %8 = vsyncpa [#allocation6], 0
    %9 = vsyncpa [#allocation4], 0
    // Predicated region
    $region2: #{tpu_custom_call.1} parent=1 // pred_check
      _
    $region3: #{tpu_custom_call.1} parent=1 // pred_check_branch
      %11 = sbr.rel (0) target = $region5
    $region4: #{tpu_custom_call.1} parent=1 // pred_region
      %s13 = ssub.s32 256, 256
      %14 = vsyncadd [#allocation3], %s13
      %s15 = sshll.u32 [#allocation2], 4
      %s16 = int_to_ptr.vmem [resolvable:$true] %s15
      %21 = dma.hbm_to_vmem [thread:$0]  %s0, 256, %s16, [#allocation3], 128, 128, 8
    $region5: #{tpu_custom_call.1} parent=1 // pred_fallthru
      _
    // Predicated region
    $region6: #{tpu_custom_call.1} parent=1 // pred_check
      _
    $region7: #{tpu_custom_call.1} parent=1 // pred_check_branch
      %23 = sbr.rel (0) target = $region9
    $region8: #{tpu_custom_call.1} parent=1 // pred_region
      %s25 = ssub.s32 256, 256
      %26 = vsyncadd [#allocation6], %s25
      %s27 = sshll.u32 [#allocation5], 4
      %s28 = int_to_ptr.vmem [resolvable:$true] %s27
      %33 = dma.hbm_to_vmem [thread:$0]  %s1, 256, %s28, [#allocation6], 128, 128, 8
    $region9: #{tpu_custom_call.1} parent=1 // pred_fallthru
      _
    // Predicated region
    $region10: #{tpu_custom_call.1} parent=1 // pred_check
      _
    $region11: #{tpu_custom_call.1} parent=1 // pred_check_branch
      %35 = sbr.rel (0) target = $region13
    $region12: #{tpu_custom_call.1} parent=1 // pred_region
      %36 = dma.done [#allocation3], 256
    $region13: #{tpu_custom_call.1} parent=1 // pred_fallthru
      _
    // Predicated region
    $region14: #{tpu_custom_call.1} parent=1 // pred_check
      _
    $region15: #{tpu_custom_call.1} parent=1 // pred_check_branch
      %38 = sbr.rel (0) target = $region17
    $region16: #{tpu_custom_call.1} parent=1 // pred_region
      %39 = dma.done [#allocation6], 256
    $region17: #{tpu_custom_call.1} parent=1 // pred_fallthru
      _
    %v40 = vld [vmem:[#allocation2] sm:$0xff]
    %v41 = vld [vmem:[#allocation5] sm:$0xff]
    %v42 = vadd.f32 %v40, 1e-07
    %v43 = vlog2.pop %v42
    %v44 = vmul.f32 %v43, 0.6931472
    %v45 = vmul.f32 %v41, %v44
    %v46 = vsub.f32 1.0, %v41
    %v47 = vsub.f32 1.0, %v40
    %v48 = vadd.f32 %v47, 1e-07
    %v49 = vlog2.pop %v48
    %v50 = vmul.f32 %v49, 0.6931472
    %v51 = vmul.f32 %v46, %v50
    %v52 = vadd.f32 %v45, 0.0
    %v53 = vadd.f32 %v51, 0.0
    %s54 = scalar_lea.vmem [#allocation2], 8
    %v55 = vld [vmem:[%s54] sm:$0xff]
    %s56 = scalar_lea.vmem [#allocation5], 8
    %v57 = vld [vmem:[%s56] sm:$0xff]
    %v58 = vadd.f32 %v55, 1e-07
    %v59 = vlog2.pop %v58
    %v60 = vmul.f32 %v59, 0.6931472
    %v61 = vmul.f32 %v57, %v60
    %v62 = vsub.f32 1.0, %v57
    %v63 = vsub.f32 1.0, %v55
    %v64 = vadd.f32 %v63, 1e-07
    %v65 = vlog2.pop %v64
    %v66 = vmul.f32 %v65, 0.6931472
    %v67 = vmul.f32 %v62, %v66
    %v68 = vadd.f32 %v52, %v61
    %v69 = vadd.f32 %v53, %v67
    %70 = vst [vmem:[#allocation7] sm:$0xff] %v68
    %71 = vst [vmem:[#allocation7 + $0x8] sm:$0xff] %v69
    // Predicated region
    $region18: #{tpu_custom_call.1} parent=1 // pred_check
      _
    $region19: #{tpu_custom_call.1} parent=1 // pred_check_branch
      %73 = sbr.rel (0) target = $region21
    $region20: #{tpu_custom_call.1} parent=1 // pred_region
      %s75 = ssub.s32 256, 256
      %76 = vsyncadd [#allocation4], %s75
      %s78 = sshll.u32 [#allocation7], 4
      %s79 = int_to_ptr.vmem [resolvable:$true] %s78
      %81 = dma.vmem_to_hbm [thread:$0]  %s79, 256, %s2, [#allocation4]
    $region21: #{tpu_custom_call.1} parent=1 // pred_fallthru
      _
    // Predicated region
    $region22: #{tpu_custom_call.1} parent=1 // pred_check
      _
    $region23: #{tpu_custom_call.1} parent=1 // pred_check_branch
      %83 = sbr.rel (0) target = $region25
    $region24: #{tpu_custom_call.1} parent=1 // pred_region
      %84 = dma.done [#allocation4], 256
    $region25: #{tpu_custom_call.1} parent=1 // pred_fallthru
      _
    %85 = vsyncpa [#allocation3], 1
    %86 = vsyncpa [#allocation6], 1
    %87 = vsyncpa [#allocation4], 1

</llo_original>
